<compile_context>
chip_gen: v5e
topology: v5e:2x2
jax: 0.10.0
libtpu: 0.0.40
codegen_flags: <defaults>
</compile_context>

<pallas_src>
import functools

import jax
import jax.numpy as jnp
from jax import lax
from jax.experimental import pallas as pl
from jax.experimental.pallas import tpu as pltpu


def additive_score_kernel(q_ref, k_ref, w_ref, u_ref, v_ref, o_ref, *,
                          tb, wn, vd, matmul_dtype):
    # q_ref: (TB, q_d)       k_ref: (TB*Wn, k_d)
    # w_ref: (v_d, q_d)      u_ref: (v_d, k_d)     v_ref: (1, v_d)
    # o_ref: (TB, Wn)
    if matmul_dtype is None:
        cast = lambda x: x
    else:
        cast = lambda x: x.astype(matmul_dtype)

    # WQ = q @ W^T  -> (TB, v_d)      (contract q_d; batched dim is MXU M)
    wq = lax.dot_general(cast(q_ref[...]), cast(w_ref[...]),
                         (((1,), (1,)), ((), ())),
                         preferred_element_type=jnp.float32)
    # UK = k @ U^T  -> (TB*Wn, v_d)   (contract k_d; batched dim is MXU M)
    uk = lax.dot_general(cast(k_ref[...]), cast(u_ref[...]),
                         (((1,), (1,)), ((), ())),
                         preferred_element_type=jnp.float32)

    # Broadcast WQ over the window (sublane broadcast) and apply tanh (EUP).
    pre = uk.reshape(tb, wn, vd) + wq.reshape(tb, 1, vd)    # (TB, Wn, v_d)
    t = jnp.tanh(pre)

    # score[b, w] = sum_v V[v] * tanh(...)[b, w, v]   (VPU multiply + XLU
    # lane-axis reduction instead of a 1-column MXU matmul).
    score = jnp.sum(t * v_ref[...], axis=-1)                # (TB, Wn)

    # Row-wise softmax over the window (f32; approx reciprocal on the EUP).
    m = jnp.max(score, axis=-1, keepdims=True)
    p = jnp.exp(score - m)
    s = jnp.sum(p, axis=-1, keepdims=True)
    o_ref[...] = (p * pl.reciprocal(s, approx=True)).astype(o_ref.dtype)


def _pick_batch_block(b, per_row_bytes, max_block=512,
                      vmem_budget_bytes=12 << 20):
    """Largest multiple-of-8 divisor of b that fits the VMEM budget.

    per_row_bytes is the per-batch-row VMEM footprint of one grid step
    (double-buffered q/k/out blocks plus f32 intermediates).  Keeping the
    block a multiple of 8 keeps the sublane dim of every per-step block
    aligned, and for b >= 16 we keep at least two grid steps so the
    "parallel" batch axis can shard across both TensorCores on v7x.
    Small or awkward batch sizes fall back to TB == b (always legal: the
    block then equals the full array dim).
    """
    budget_tb = max(8, vmem_budget_bytes // max(per_row_bytes, 1))
    hi = min(max_block, budget_tb, b if b < 16 else b // 2)
    for d in range(int(hi), 7, -1):
        if b % d == 0 and d % 8 == 0:
            return d
    return b


def additive_score(q, k, W, U, V, *, max_batch_block=512, matmul_dtype=None):
    B, one, q_d = q.shape
    _, Wn, k_d = k.shape
    v_d = W.shape[0]
    assert one == 1 and W.shape == (v_d, q_d)
    assert U.shape == (v_d, k_d) and V.shape == (v_d, 1)

    itemsize = jnp.dtype(q.dtype).itemsize
    # Per-batch-row VMEM per grid step: double-buffered q/k/out blocks plus
    # the f32 (Wn, v_d) pre-activation + tanh intermediates.
    per_row_bytes = (2 * (Wn * k_d + q_d + Wn) * itemsize
                     + 2 * Wn * v_d * 4)
    TB = _pick_batch_block(B, per_row_bytes, max_batch_block)
    assert B % TB == 0

    # Free, wrapper-side layout plumbing: 2-D feature-last slabs in, a 2-D
    # score slab out (reshaped back to (B, 1, Wn) after the pallas_call).
    q2 = q.reshape(B, q_d)
    k2 = k.reshape(B * Wn, k_d)
    v_row = V.reshape(1, v_d)

    kernel = functools.partial(additive_score_kernel, tb=TB, wn=Wn, vd=v_d,
                               matmul_dtype=matmul_dtype)

    out2 = pl.pallas_call(
        kernel,
        out_shape=jax.ShapeDtypeStruct((B, Wn), q.dtype),
        grid_spec=pltpu.PrefetchScalarGridSpec(
            num_scalar_prefetch=0,
            grid=(B // TB,),
            in_specs=[
                pl.BlockSpec((TB, q_d), lambda b: (b, 0)),
                pl.BlockSpec((TB * Wn, k_d), lambda b: (b, 0)),
                pl.BlockSpec((v_d, q_d), lambda b: (0, 0)),   # resident weights
                pl.BlockSpec((v_d, k_d), lambda b: (0, 0)),
                pl.BlockSpec((1, v_d), lambda b: (0, 0)),
            ],
            out_specs=pl.BlockSpec((TB, Wn), lambda b: (b, 0)),
        ),
        compiler_params=pltpu.CompilerParams(
            dimension_semantics=("parallel",),
        ),
    )(q2, k2, W, U, v_row)

    return out2.reshape(B, 1, Wn)


def additive_score_ref(q, k, W, U, V):
    # Pure-JAX reference mirroring the PyTorch forward exactly.
    Wq = jnp.einsum("vq,bwq->bvw", W, jnp.repeat(q, k.shape[1], axis=1))
    Uk = jnp.einsum("vk,bwk->bvw", U, k)
    score = jnp.einsum("vo,bvw->bow", V, jnp.tanh(Wq + Uk))
    return jax.nn.softmax(score, axis=-1)


if __name__ == "__main__":
    B, window, q_d, k_d, v_d = 2, 8, 16, 16, 32

    key = jax.random.PRNGKey(0)
    kq, kk, kW, kU, kV = jax.random.split(key, 5)
    q = jax.random.normal(kq, (B, 1, q_d), dtype=jnp.float32)
    k = jax.random.normal(kk, (B, window, k_d), dtype=jnp.float32)
    # Deterministic synthetic parameters (mirrors torch.randn init shapes).
    W = jax.random.normal(kW, (v_d, q_d), dtype=jnp.float32)
    U = jax.random.normal(kU, (v_d, k_d), dtype=jnp.float32)
    V = jax.random.normal(kV, (v_d, 1), dtype=jnp.float32)

    # f32 matmuls for the small correctness demo; pass matmul_dtype=jnp.bfloat16
    # on v6e/v7x for the bf16-MXU fast path (tolerance then loosens to ~1e-2).
    out = additive_score(q, k, W, U, V)
    jax.block_until_ready(out)

    ref = additive_score_ref(q, k, W, U, V)
    assert out.shape == (B, 1, window)
    # Tolerance loosened slightly vs 1e-5 purely because of the approximate
    # EUP reciprocal in the softmax denominator.
    assert jnp.allclose(out, ref, atol=2e-3, rtol=2e-3)

    print("KERNEL_OK")
</pallas_src>

<mosaic_0001>
module attributes {stable_mosaic.version = 11 : i64} {
  func.func @additive_score_kernel(%arg0: i32, %arg1: memref<2x16xf32, #tpu.memory_space<vmem>>, %arg2: memref<16x16xf32, #tpu.memory_space<vmem>>, %arg3: memref<32x16xf32, #tpu.memory_space<vmem>>, %arg4: memref<32x16xf32, #tpu.memory_space<vmem>>, %arg5: memref<1x32xf32, #tpu.memory_space<vmem>>, %arg6: memref<2x8xf32, #tpu.memory_space<vmem>>) attributes {dimension_semantics = [#tpu.dimension_semantics<parallel>], iteration_bounds = array<i64: 1>, scalar_prefetch = 0 : i64, scratch_operands = 0 : i64, tpu.core_type = #tpu.core_type<tc>, window_params = [{transform_indices = @transform_0, window_bounds = array<i64: 2, 16>}, {transform_indices = @transform_1, window_bounds = array<i64: 16, 16>}, {pipeline_mode = #tpu.pipeline_mode<synchronous>, transform_indices = @transform_2, window_bounds = array<i64: 32, 16>}, {pipeline_mode = #tpu.pipeline_mode<synchronous>, transform_indices = @transform_3, window_bounds = array<i64: 32, 16>}, {pipeline_mode = #tpu.pipeline_mode<synchronous>, transform_indices = @transform_4, window_bounds = array<i64: 1, 32>}, {transform_indices = @transform_5, window_bounds = array<i64: 2, 8>}]} {
    %c0 = arith.constant 0 : index
    %c0_0 = arith.constant 0 : index
    %0 = vector.load %arg1[%c0, %c0_0] : memref<2x16xf32, #tpu.memory_space<vmem>>, vector<2x16xf32>
    %c0_1 = arith.constant 0 : index
    %c0_2 = arith.constant 0 : index
    %1 = vector.load %arg3[%c0_1, %c0_2] : memref<32x16xf32, #tpu.memory_space<vmem>>, vector<32x16xf32>
    %cst = arith.constant dense<0.000000e+00> : vector<2x32xf32>
    %2 = tpu.matmul %0, %1, %cst {dimension_numbers = #tpu.dot_dimension_numbers<[1], [1], [0], [0], [0, 0, 1, 0], [], []>} : vector<2x16xf32>, vector<32x16xf32>, vector<2x32xf32> -> vector<2x32xf32>
    %c0_3 = arith.constant 0 : index
    %c0_4 = arith.constant 0 : index
    %3 = vector.load %arg2[%c0_3, %c0_4] : memref<16x16xf32, #tpu.memory_space<vmem>>, vector<16x16xf32>
    %c0_5 = arith.constant 0 : index
    %c0_6 = arith.constant 0 : index
    %4 = vector.load %arg4[%c0_5, %c0_6] : memref<32x16xf32, #tpu.memory_space<vmem>>, vector<32x16xf32>
    %cst_7 = arith.constant dense<0.000000e+00> : vector<16x32xf32>
    %5 = tpu.matmul %3, %4, %cst_7 {dimension_numbers = #tpu.dot_dimension_numbers<[1], [1], [0], [0], [0, 0, 1, 0], [], []>} : vector<16x16xf32>, vector<32x16xf32>, vector<16x32xf32> -> vector<16x32xf32>
    %6 = vector.shape_cast %5 : vector<16x32xf32> to vector<2x8x32xf32>
    %7 = vector.shape_cast %2 : vector<2x32xf32> to vector<2x1x32xf32>
    %8 = vector.broadcast %7 : vector<2x1x32xf32> to vector<2x8x32xf32>
    %9 = arith.addf %6, %8 : vector<2x8x32xf32>
    %10 = math.tanh %9 : vector<2x8x32xf32>
    %c0_8 = arith.constant 0 : index
    %c0_9 = arith.constant 0 : index
    %11 = vector.load %arg5[%c0_8, %c0_9] : memref<1x32xf32, #tpu.memory_space<vmem>>, vector<1x32xf32>
    %12 = vector.shape_cast %11 : vector<1x32xf32> to vector<1x1x32xf32>
    %13 = vector.broadcast %12 : vector<1x1x32xf32> to vector<2x8x32xf32>
    %14 = arith.mulf %10, %13 : vector<2x8x32xf32>
    %cst_10 = arith.constant dense<0.000000e+00> : vector<2x8xf32>
    %15 = vector.multi_reduction <add>, %14, %cst_10 [2] : vector<2x8x32xf32> to vector<2x8xf32>
    %cst_11 = arith.constant dense<0xFF800000> : vector<2xf32>
    %16 = vector.multi_reduction <maximumf>, %15, %cst_11 [1] : vector<2x8xf32> to vector<2xf32>
    %17 = vector.shape_cast %16 : vector<2xf32> to vector<2x1xf32>
    %18 = vector.broadcast %17 : vector<2x1xf32> to vector<2x8xf32>
    %19 = arith.subf %15, %18 : vector<2x8xf32>
    %20 = math.exp %19 : vector<2x8xf32>
    %cst_12 = arith.constant dense<0.000000e+00> : vector<2xf32>
    %21 = vector.multi_reduction <add>, %20, %cst_12 [1] : vector<2x8xf32> to vector<2xf32>
    %22 = vector.shape_cast %21 : vector<2xf32> to vector<2x1xf32>
    %23 = tpu.reciprocal %22 {approx = true} : vector<2x1xf32> -> vector<2x1xf32>
    %24 = vector.broadcast %23 : vector<2x1xf32> to vector<2x8xf32>
    %25 = arith.mulf %20, %24 : vector<2x8xf32>
    %c0_13 = arith.constant 0 : index
    %c0_14 = arith.constant 0 : index
    %26 = vector.load %arg6[%c0_13, %c0_14] : memref<2x8xf32, #tpu.memory_space<vmem>>, vector<2x8xf32>
    tpu.vector_store %arg6[%c0_13, %c0_14], %25 {strides = array<i32>} : memref<2x8xf32, #tpu.memory_space<vmem>>, vector<2x8xf32>,
    return
  }
  func.func @transform_0(%arg0: i32) -> (i32, i32) {
    %c0_i32 = arith.constant 0 : i32
    %c0_i32_0 = arith.constant 0 : i32
    return %arg0, %c0_i32 : i32, i32
  }
  func.func @transform_1(%arg0: i32) -> (i32, i32) {
    %c0_i32 = arith.constant 0 : i32
    %c0_i32_0 = arith.constant 0 : i32
    return %arg0, %c0_i32 : i32, i32
  }
  func.func @transform_2(%arg0: i32) -> (i32, i32) {
    %c0_i32 = arith.constant 0 : i32
    %c0_i32_0 = arith.constant 0 : i32
    %c0_i32_1 = arith.constant 0 : i32
    return %c0_i32, %c0_i32_0 : i32, i32
  }
  func.func @transform_3(%arg0: i32) -> (i32, i32) {
    %c0_i32 = arith.constant 0 : i32
    %c0_i32_0 = arith.constant 0 : i32
    %c0_i32_1 = arith.constant 0 : i32
    return %c0_i32, %c0_i32_0 : i32, i32
  }
  func.func @transform_4(%arg0: i32) -> (i32, i32) {
    %c0_i32 = arith.constant 0 : i32
    %c0_i32_0 = arith.constant 0 : i32
    %c0_i32_1 = arith.constant 0 : i32
    return %c0_i32, %c0_i32_0 : i32, i32
  }
  func.func @transform_5(%arg0: i32) -> (i32, i32) {
    %c0_i32 = arith.constant 0 : i32
    %c0_i32_0 = arith.constant 0 : i32
    return %arg0, %c0_i32 : i32, i32
  }
}

</mosaic_0001>

<llo_original>
// kernel: tpu_custom_call.1
$region0: #{tpu_custom_call.1}
  #allocation0 [shape = 'u32[]', space=smem, size = 0x4, offset = 0x4, fixed_abs, tag = 'smem constant byte address 0x4 - core index']
  #allocation1 [shape = 'u32[72,128]{1,0:T(1,128)}', space=vmem, size = 0x9000, scoped, tag = 'internal scratch']
  %s0 = inlined_call_operand.vmem [shape: f32[2,16], index: 0, kind: input, shape index: {}]
  %s1 = inlined_call_operand.vmem [shape: f32[16,16], index: 1, kind: input, shape index: {}]
  %s2 = inlined_call_operand.vmem [shape: f32[32,16], index: 2, kind: input, shape index: {}]
  %s3 = inlined_call_operand.vmem [shape: f32[32,16], index: 3, kind: input, shape index: {}]
  %s4 = inlined_call_operand.vmem [shape: f32[1,32], index: 4, kind: input, shape index: {}]
  %s5 = inlined_call_operand.hbm [shape: f32[2,8], index: 5, kind: output, shape index: {}]
  %s6 = sld [smem:[#allocation0]]
  $region30: #{tpu_custom_call.1} parent=0
    _
  %s8 = ssub.s32 1, %s6
  %s9 = scalar_select 0, %s8, %s6
  $region1: #{tpu_custom_call.1} parent=0
    #allocation2 [shape = 'u8[1024]{0}', space=vmem, size = 0x400, scoped, tag = 'output window, operand 0, single buffered']
    #allocation3 [shape = 's32[1]{0}', space=sflag, size = 0x4, scoped, tag = 'scoped memory for tpu_custom_call.1']
    %10 = vsyncpa [#allocation3], 0
    // Predicated region
    $region2: #{tpu_custom_call.1} parent=1 // pred_check
      _
    $region3: #{tpu_custom_call.1} parent=1 // pred_check_branch
      %12 = sbr.rel (0) target = $region5
    $region4: #{tpu_custom_call.1} parent=1 // pred_region
      _
    $region5: #{tpu_custom_call.1} parent=1 // pred_fallthru
      _
    // Predicated region
    $region6: #{tpu_custom_call.1} parent=1 // pred_check
      _
    $region7: #{tpu_custom_call.1} parent=1 // pred_check_branch
      %14 = sbr.rel (0) target = $region9
    $region8: #{tpu_custom_call.1} parent=1 // pred_region
      _
    $region9: #{tpu_custom_call.1} parent=1 // pred_fallthru
      _
    // Predicated region
    $region10: #{tpu_custom_call.1} parent=1 // pred_check
      _
    $region11: #{tpu_custom_call.1} parent=1 // pred_check_branch
      %16 = sbr.rel (0) target = $region13
    $region12: #{tpu_custom_call.1} parent=1 // pred_region
      _
    $region13: #{tpu_custom_call.1} parent=1 // pred_fallthru
      _
    // Predicated region
    $region14: #{tpu_custom_call.1} parent=1 // pred_check
      _
    $region15: #{tpu_custom_call.1} parent=1 // pred_check_branch
      %18 = sbr.rel (0) target = $region17
    $region16: #{tpu_custom_call.1} parent=1 // pred_region
      _
    $region17: #{tpu_custom_call.1} parent=1 // pred_fallthru
      _
    // Predicated region
    $region18: #{tpu_custom_call.1} parent=1 // pred_check
      _
    $region19: #{tpu_custom_call.1} parent=1 // pred_check_branch
      %20 = sbr.rel (0) target = $region21
    $region20: #{tpu_custom_call.1} parent=1 // pred_region
      _
    $region21: #{tpu_custom_call.1} parent=1 // pred_fallthru
      _
    %v21 = vld [vmem:[%s0] sm:$0x3]
    %v22 = vld [vmem:[%s2] sm:$0xff]
    %v23 = vld [vmem:[%s2 + $0x8] sm:$0xff]
    %v24 = vld [vmem:[%s2 + $0x10] sm:$0xff]
    %v25 = vld [vmem:[%s2 + $0x18] sm:$0xff]
    %vm26 = vcmask 130048
    %v28 = vsel %vm26, %v21, 0
    %v31 = vsel %vm26, %v22, 0
    %v34 = vsel %vm26, %v23, 0
    %v37 = vsel %vm26, %v24, 0
    %v40 = vsel %vm26, %v25, 0
    %42 = vmatpush.xpose.msra.mxu0 0.0
    %43 = vmatpush.xpose.msra.mxu0 0.0
    %44 = vmatpush.xpose.msra.mxu0 0.0
    %45 = vmatpush.xpose.msra.mxu0 0.0
    %46 = vmatpush.xpose.msra.mxu0 0.0
    %47 = vmatpush.xpose.msra.mxu0 0.0
    %48 = vmatpush.xpose.msra.mxu0 0.0
    %49 = vmatpush.xpose.msra.mxu0 0.0
    %50 = vmatpush.xpose.msra.mxu0 0.0
    %51 = vmatpush.xpose.msra.mxu0 0.0
    %52 = vmatpush.xpose.msra.mxu0 0.0
    %53 = vmatpush.xpose.msra.mxu0 0.0
    %54 = vmatpush.xpose.msra.mxu0 %v40
    %55 = vmatpush.xpose.msra.mxu0 %v37
    %56 = vmatpush.xpose.msra.mxu0 %v34
    %57 = vmatpush.xpose.msra.mxu0 %v31
    %58 = vmatmul.f32.gmra.mxu0 %v28
    %v59 = vpop.f32.mrf.mxu0
    %v60 = vadd.f32 0.0, %v59
    %61 = vdwg.mxu0
    %v62 = vld [vmem:[%s1] sm:$0xff]
    %v63 = vld [vmem:[%s1 + $0x8] sm:$0xff]
    %v64 = vld [vmem:[%s3] sm:$0xff]
    %v65 = vld [vmem:[%s3 + $0x8] sm:$0xff]
    %v66 = vld [vmem:[%s3 + $0x10] sm:$0xff]
    %v67 = vld [vmem:[%s3 + $0x18] sm:$0xff]
    %v69 = vsel %vm26, %v62, 0
    %v72 = vsel %vm26, %v63, 0
    %v75 = vsel %vm26, %v64, 0
    %v78 = vsel %vm26, %v65, 0
    %v81 = vsel %vm26, %v66, 0
    %v84 = vsel %vm26, %v67, 0
    %86 = vmatpush.xpose.msra.mxu0 0.0
    %87 = vmatpush.xpose.msra.mxu0 0.0
    %88 = vmatpush.xpose.msra.mxu0 0.0
    %89 = vmatpush.xpose.msra.mxu0 0.0
    %90 = vmatpush.xpose.msra.mxu0 0.0
    %91 = vmatpush.xpose.msra.mxu0 0.0
    %92 = vmatpush.xpose.msra.mxu0 0.0
    %93 = vmatpush.xpose.msra.mxu0 0.0
    %94 = vmatpush.xpose.msra.mxu0 0.0
    %95 = vmatpush.xpose.msra.mxu0 0.0
    %96 = vmatpush.xpose.msra.mxu0 0.0
    %97 = vmatpush.xpose.msra.mxu0 0.0
    %98 = vmatpush.xpose.msra.mxu0 %v84
    %99 = vmatpush.xpose.msra.mxu0 %v81
    %100 = vmatpush.xpose.msra.mxu0 %v78
    %101 = vmatpush.xpose.msra.mxu0 %v75
    %102 = vmatmul.f32.gmra.mxu0 %v69
    %v103 = vpop.f32.mrf.mxu0
    %v104 = vadd.f32 0.0, %v103
    %105 = vmatmul.f32.gmra.mxu0 %v72
    %v106 = vpop.f32.mrf.mxu0
    %v107 = vadd.f32 0.0, %v106
    %108 = vdwg.mxu0
    %v110 = vrot.slane %v60, 1
    %v111 = vperm.slane %v60, 0
    %v112 = vperm.slane %v110, 0
    %v115 = vadd.f32 %v104, %v111
    %v116 = vadd.f32 %v107, %v112
    %v117 = vtanh.pop %v115
    %v118 = vtanh.pop %v116
    %v119 = vld [vmem:[%s4] sm:$0x1]
    %v121 = vperm.slane %v119, 0
    %v123 = vmul.f32 %v117, %v121
    %v124 = vmul.f32 %v118, %v121
    %vm125 = vcmask 261120
    %v126 = vsel %vm125, %v123, 0.0
    %127 = vadd.xlane.f32.xlu0 %v126
    %v128 = vpop.xlane.xlu0 %127
    %v129 = vsel %vm125, %v124, 0.0
    %130 = vadd.xlane.f32.xlu0 %v129
    %v131 = vpop.xlane.xlu0 %130
    %v134 = vlaneseq
    %v135 = vand.u32 %v134, 127
    %v136 = vperm.slane %v128, %v135
    %v137 = vperm.slane %v131, %v135
    %vm138 = vcmask 1041409
    %v139 = vsel %vm138, %v137, %v136
    %vm141 = vcmask 58368
    %v142 = vsel %vm141, %v139, -inf
    %143 = vmax.xlane.f32.xlu0 %v142
    %v144 = vpop.xlane.xlu0 %143
    %v146 = vperm.slane %v144, 0
    %v147 = vperm.slane %v144, 1
    %v150 = vsub.f32 %v128, %v146
    %v151 = vsub.f32 %v131, %v147
    %v152 = vmul.f32 %v150, 1.442695
    %v153 = vpow.pop %v152
    %v154 = vmul.f32 %v151, 1.442695
    %v155 = vpow.pop %v154
    %158 = vset.pattern.permute.xlu0 0
    %159 = vperm.xlu0 %158, %v153
    %v160 = vpop.permute.xlu0 %159
    %161 = vset.pattern.permute.xlu0 0
    %162 = vperm.xlu0 %161, %v155
    %v163 = vpop.permute.xlu0 %162
    %v164 = vperm.slane %v160, %v135
    %v165 = vperm.slane %v163, %v135
    %v166 = vsel %vm138, %v165, %v164
    %v168 = vsel %vm141, %v166, 0.0
    %169 = vadd.xlane.f32.xlu0 %v168
    %v170 = vpop.xlane.xlu0 %169
    %v171 = vrcp.pop %v170
    %v173 = vperm.slane %v171, 0
    %v174 = vperm.slane %v171, 1
    %v177 = vmul.f32 %v153, %v173
    %v178 = vmul.f32 %v155, %v174
    %181 = vset.pattern.permute.xlu0 0
    %182 = vperm.xlu0 %181, %v177
    %v183 = vpop.permute.xlu0 %182
    %184 = vset.pattern.permute.xlu0 0
    %185 = vperm.xlu0 %184, %v178
    %v186 = vpop.permute.xlu0 %185
    %v187 = vperm.slane %v183, %v135
    %v188 = vperm.slane %v186, %v135
    %v189 = vsel %vm138, %v188, %v187
    %191 = vst.msk [vmem:[#allocation2] sm:$0x3] %vm141, %v189
    // Predicated region
    $region22: #{tpu_custom_call.1} parent=1 // pred_check
      _
    $region23: #{tpu_custom_call.1} parent=1 // pred_check_branch
      %193 = sbr.rel (0) target = $region25
    $region24: #{tpu_custom_call.1} parent=1 // pred_region
      %195 = vsyncadd [#allocation3], 0
      %s197 = sshll.u32 [#allocation2], 4
      %s198 = int_to_ptr.vmem [resolvable:$true] %s197
      %s199 = sshll.u32 %s5, 4
      %s200 = int_to_ptr.hbm [resolvable:$true] %s199
      %202 = dma.vmem_to_hbm [thread:$0]  %s198, 32, %s200, [#allocation3]
    $region25: #{tpu_custom_call.1} parent=1 // pred_fallthru
      _
    // Predicated region
    $region26: #{tpu_custom_call.1} parent=1 // pred_check
      _
    $region27: #{tpu_custom_call.1} parent=1 // pred_check_branch
      %204 = sbr.rel (0) target = $region29
    $region28: #{tpu_custom_call.1} parent=1 // pred_region
      %206 = dma.done [#allocation3], 32
    $region29: #{tpu_custom_call.1} parent=1 // pred_fallthru
      _
    %207 = vsyncpa [#allocation3], 1

</llo_original>
